<compile_context>
chip_gen: v7x
topology: tpu7x:2x2x1
jax: 0.10.0
libtpu: 0.0.40
codegen_flags: <defaults>
</compile_context>

<pallas_src>
import math

import jax
import jax.numpy as jnp
from jax.experimental import pallas as pl
from jax.experimental.pallas import tpu as pltpu

INV_SQRT2 = 0.7071067811865476
SQRT_2_OVER_PI = math.sqrt(2.0 / math.pi)


def _gelu_exact(x):
    # PyTorch nn.GELU() default: exact erf formulation (VALU polynomial).
    return 0.5 * x * (1.0 + jax.lax.erf(x * INV_SQRT2))


def _gelu_tanh(x):
    # tanh approximation -> transcendental goes to the EUP slot (own VLIW slot).
    return 0.5 * x * (1.0 + jnp.tanh(SQRT_2_OVER_PI * (x + 0.044715 * x * x * x)))


def _make_mlp_kernel(reduce_last: bool, approximate_gelu: bool, compute_dtype):
    gelu = _gelu_tanh if approximate_gelu else _gelu_exact

    def kernel(s_ref, t_ref, w1s_ref, w1t_ref, b1_ref, w2_ref, b2_ref,
               w3_ref, b3_ref, o_ref):
        s = s_ref[...].astype(compute_dtype)                          # (tb, s_emb)
        t = t_ref[...].astype(compute_dtype)                          # (tb, t_dim)
        # Layer 1: fused concat as split-K matmul, fp32 accumulation.
        h = jnp.dot(s, w1s_ref[...], preferred_element_type=jnp.float32)
        h = h + jnp.dot(t, w1t_ref[...], preferred_element_type=jnp.float32)
        h = gelu(h + b1_ref[...])                                     # fp32 elementwise
        # Layer 2
        h = jnp.dot(h.astype(compute_dtype), w2_ref[...],
                    preferred_element_type=jnp.float32)
        h = gelu(h + b2_ref[...])
        # Layer 3
        if reduce_last:
            # d_out == 1: VPU multiply + lane reduction; w3_ref is fp32 (1, H).
            y = jnp.sum(h * w3_ref[...], axis=-1, keepdims=True)
        else:
            y = jnp.dot(h.astype(compute_dtype), w3_ref[...],
                        preferred_element_type=jnp.float32)
        o_ref[...] = (y + b3_ref[...]).astype(o_ref.dtype)

    return kernel


def _round_up(x, m):
    return ((x + m - 1) // m) * m


def _pick_batch_tile(B, tb):
    """Batch-tile heuristic: one step for small B, >=2 balanced steps for
    medium B (keeps both v7x TensorCores busy), fixed tb tiles for large B."""
    if B <= min(tb, 256):
        return B                                      # single step; overhead-bound regime
    if B <= 2 * tb:
        return max(8, _round_up(pl.cdiv(B, 2), 8))    # 2 near-even steps
    return tb


def langevin_scaling_forward(s, t, params, *, tb=512, approximate_gelu=True,
                             compute_dtype=jnp.bfloat16, weight_buffer_count=None):
    """params = dict(w1,b1,w2,b2,w3,b3). s:(B,s_emb), t:(B,t_dim) -> (B,out_dim).

    Defaults are the performance configuration (bf16 MXU operands + tanh GELU).
    For bit-parity with the fp32/erf torch reference, pass
    approximate_gelu=False, compute_dtype=jnp.float32.
    """
    B, s_emb = s.shape
    t_dim = t.shape[1]

    w1 = params["w1"].astype(jnp.float32)
    b1 = params["b1"].astype(jnp.float32)
    w2 = params["w2"].astype(jnp.float32)
    b2 = params["b2"].astype(jnp.float32)
    w3 = params["w3"].astype(jnp.float32)
    b3 = params["b3"].astype(jnp.float32)

    assert w1.shape[0] == s_emb + t_dim, "w1 fan_in must equal s_emb + t_dim"
    hidden = w1.shape[1]
    d_out = w3.shape[1]

    # Zero-pad hidden features to a multiple of 128 lanes (exactness preserved).
    hp = _round_up(hidden, 128)
    ph = hp - hidden
    if ph:
        w1 = jnp.pad(w1, ((0, 0), (0, ph)))
        b1 = jnp.pad(b1, ((0, ph),))
        w2 = jnp.pad(w2, ((0, ph), (0, ph)))
        b2 = jnp.pad(b2, ((0, ph),))
        w3 = jnp.pad(w3, ((0, ph), (0, 0)))

    # Split w1 so the kernel never needs a concatenated [s, t] in HBM.
    w1s = w1[:s_emb].astype(compute_dtype)                            # (s_emb, hp)
    w1t = w1[s_emb:].astype(compute_dtype)                            # (t_dim, hp)
    w2c = w2.astype(compute_dtype)                                    # (hp, hp)

    reduce_last = (d_out == 1)
    # Reduce path never touches the MXU -> keep w3 in fp32 (no useless bf16 trip).
    w3_arg = w3.T if reduce_last else w3.astype(compute_dtype)        # (1,hp) / (hp,d_out)

    b1 = b1.reshape(1, -1)
    b2 = b2.reshape(1, -1)
    b3 = b3.reshape(1, -1)

    tb_eff = _pick_batch_tile(B, tb)
    grid = (pl.cdiv(B, tb_eff),)

    # Grid-invariant weights: optional single-buffering (weight_buffer_count=1).
    extra = {} if weight_buffer_count is None else dict(
        pipeline_mode=pl.Buffered(weight_buffer_count))

    def full(arr):
        nd = arr.ndim
        return pl.BlockSpec(arr.shape, lambda i, _nd=nd: (0,) * _nd, **extra)

    kernel = _make_mlp_kernel(reduce_last, approximate_gelu, compute_dtype)

    out = pl.pallas_call(
        kernel,
        out_shape=jax.ShapeDtypeStruct((B, d_out), jnp.float32),
        grid_spec=pltpu.PrefetchScalarGridSpec(
            num_scalar_prefetch=0,
            grid=grid,
            in_specs=[
                pl.BlockSpec((tb_eff, s_emb), lambda i: (i, 0)),
                pl.BlockSpec((tb_eff, t_dim), lambda i: (i, 0)),
                full(w1s),
                full(w1t),
                full(b1),
                full(w2c),
                full(b2),
                full(w3_arg),
                full(b3),
            ],
            out_specs=pl.BlockSpec((tb_eff, d_out), lambda i: (i, 0)),
        ),
        compiler_params=pltpu.CompilerParams(
            dimension_semantics=("parallel",)),
    )(s, t, w1s, w1t, b1, w2c, b2, w3_arg, b3)
    return out


def init_params(key, s_emb_dim, t_dim, hidden_dim=64, out_dim=1, zero_init=False):
    """Deterministic init mimicking PyTorch nn.Linear (uniform +/- 1/sqrt(fan_in))."""
    d_in = s_emb_dim + t_dim
    ks = jax.random.split(key, 6)

    def linear(kw, kb, fan_in, fan_out):
        bound = 1.0 / math.sqrt(fan_in)
        w = jax.random.uniform(kw, (fan_in, fan_out), jnp.float32, -bound, bound)
        b = jax.random.uniform(kb, (fan_out,), jnp.float32, -bound, bound)
        return w, b

    w1, b1 = linear(ks[0], ks[1], d_in, hidden_dim)
    w2, b2 = linear(ks[2], ks[3], hidden_dim, hidden_dim)
    w3, b3 = linear(ks[4], ks[5], hidden_dim, out_dim)
    if zero_init:
        w3 = jnp.zeros_like(w3)
        b3 = jnp.full_like(b3, 0.01)
    return dict(w1=w1, b1=b1, w2=w2, b2=b2, w3=w3, b3=b3)


def _reference(s, t, p, *, approximate, compute_dtype):
    """Pure-JAX reference matching the kernel's numerics configuration."""
    x = jnp.concatenate([s, t], axis=-1)

    def lin(a, w, b):
        return jnp.dot(a.astype(compute_dtype), w.astype(compute_dtype),
                       preferred_element_type=jnp.float32) + b

    h = jax.nn.gelu(lin(x, p["w1"], p["b1"]), approximate=approximate)
    h = jax.nn.gelu(lin(h, p["w2"], p["b2"]), approximate=approximate)
    return lin(h, p["w3"], p["b3"])


if __name__ == "__main__":
    key = jax.random.PRNGKey(0)
    keys = jax.random.split(key, 9)

    s_emb_dim, t_dim, hidden_dim = 32, 32, 64

    # --- Test 1: module-default shapes (d_out=1, reduce tail), perf defaults
    #     (bf16 MXU operands + tanh GELU) ---
    B1 = 8
    s1 = jax.random.normal(keys[0], (B1, s_emb_dim), jnp.float32)
    t1 = jax.random.normal(keys[1], (B1, t_dim), jnp.float32)
    p1 = init_params(keys[2], s_emb_dim, t_dim, hidden_dim, out_dim=1)
    y1 = jax.block_until_ready(langevin_scaling_forward(s1, t1, p1))
    y1_ref = _reference(s1, t1, p1, approximate=True, compute_dtype=jnp.bfloat16)
    assert y1.shape == (B1, 1)
    assert jnp.allclose(y1, y1_ref, atol=2e-2, rtol=2e-2), \
        float(jnp.max(jnp.abs(y1 - y1_ref)))

    # --- Test 2: exact mode (fp32 operands + erf GELU), multi-step ragged grid,
    #     d_out>1 (MXU tail path); tight tolerance vs fp32 reference ---
    B2, out_dim2 = 300, 3
    s2 = jax.random.normal(keys[3], (B2, s_emb_dim), jnp.float32)
    t2 = jax.random.normal(keys[4], (B2, t_dim), jnp.float32)
    p2 = init_params(keys[5], s_emb_dim, t_dim, hidden_dim, out_dim2)
    y2 = jax.block_until_ready(
        langevin_scaling_forward(s2, t2, p2, tb=128,
                                 approximate_gelu=False,
                                 compute_dtype=jnp.float32))
    y2_ref = _reference(s2, t2, p2, approximate=False, compute_dtype=jnp.float32)
    assert y2.shape == (B2, out_dim2)
    assert jnp.allclose(y2, y2_ref, atol=1e-4, rtol=1e-4), \
        float(jnp.max(jnp.abs(y2 - y2_ref)))

    # --- Test 3: perf defaults, medium batch -> 2 balanced grid steps
    #     (v7x megacore split: tb_eff=152 for B=300), d_out=1 reduce path ---
    B3 = 300
    s3 = jax.random.normal(keys[6], (B3, s_emb_dim), jnp.float32)
    t3 = jax.random.normal(keys[7], (B3, t_dim), jnp.float32)
    p3 = init_params(keys[8], s_emb_dim, t_dim, hidden_dim, out_dim=1)
    y3 = jax.block_until_ready(langevin_scaling_forward(s3, t3, p3))
    y3_ref = _reference(s3, t3, p3, approximate=True, compute_dtype=jnp.bfloat16)
    assert y3.shape == (B3, 1)
    assert jnp.allclose(y3, y3_ref, atol=2e-2, rtol=2e-2), \
        float(jnp.max(jnp.abs(y3 - y3_ref)))

    print("KERNEL_OK")
</pallas_src>

<mosaic_0001>
module attributes {stable_mosaic.version = 11 : i64} {
  func.func @kernel(%arg0: i32, %arg1: memref<8x32xf32, #tpu.memory_space<vmem>>, %arg2: memref<8x32xf32, #tpu.memory_space<vmem>>, %arg3: memref<32x128xbf16, #tpu.memory_space<vmem>>, %arg4: memref<32x128xbf16, #tpu.memory_space<vmem>>, %arg5: memref<1x128xf32, #tpu.memory_space<vmem>>, %arg6: memref<128x128xbf16, #tpu.memory_space<vmem>>, %arg7: memref<1x128xf32, #tpu.memory_space<vmem>>, %arg8: memref<1x128xf32, #tpu.memory_space<vmem>>, %arg9: memref<1x1xf32, #tpu.memory_space<vmem>>, %arg10: memref<8x1xf32, #tpu.memory_space<vmem>>) attributes {dimension_semantics = [#tpu.dimension_semantics<parallel>], iteration_bounds = array<i64: 1>, scalar_prefetch = 0 : i64, scratch_operands = 0 : i64, tpu.core_type = #tpu.core_type<tc>, window_params = [{transform_indices = @transform_0, window_bounds = array<i64: 8, 32>}, {transform_indices = @transform_1, window_bounds = array<i64: 8, 32>}, {pipeline_mode = #tpu.pipeline_mode<synchronous>, transform_indices = @transform_2, window_bounds = array<i64: 32, 128>}, {pipeline_mode = #tpu.pipeline_mode<synchronous>, transform_indices = @transform_3, window_bounds = array<i64: 32, 128>}, {pipeline_mode = #tpu.pipeline_mode<synchronous>, transform_indices = @transform_4, window_bounds = array<i64: 1, 128>}, {pipeline_mode = #tpu.pipeline_mode<synchronous>, transform_indices = @transform_5, window_bounds = array<i64: 128, 128>}, {pipeline_mode = #tpu.pipeline_mode<synchronous>, transform_indices = @transform_6, window_bounds = array<i64: 1, 128>}, {pipeline_mode = #tpu.pipeline_mode<synchronous>, transform_indices = @transform_7, window_bounds = array<i64: 1, 128>}, {pipeline_mode = #tpu.pipeline_mode<synchronous>, transform_indices = @transform_8, window_bounds = array<i64: 1, 1>}, {transform_indices = @transform_9, window_bounds = array<i64: 8, 1>}]} {
    %c0 = arith.constant 0 : index
    %c0_0 = arith.constant 0 : index
    %0 = vector.load %arg1[%c0, %c0_0] : memref<8x32xf32, #tpu.memory_space<vmem>>, vector<8x32xf32>
    %1 = arith.truncf %0 : vector<8x32xf32> to vector<8x32xbf16>
    %c0_1 = arith.constant 0 : index
    %c0_2 = arith.constant 0 : index
    %2 = vector.load %arg2[%c0_1, %c0_2] : memref<8x32xf32, #tpu.memory_space<vmem>>, vector<8x32xf32>
    %3 = arith.truncf %2 : vector<8x32xf32> to vector<8x32xbf16>
    %c0_3 = arith.constant 0 : index
    %c0_4 = arith.constant 0 : index
    %4 = vector.load %arg3[%c0_3, %c0_4] : memref<32x128xbf16, #tpu.memory_space<vmem>>, vector<32x128xbf16>
    %cst = arith.constant dense<0.000000e+00> : vector<8x128xf32>
    %5 = tpu.matmul %1, %4, %cst {dimension_numbers = #tpu.dot_dimension_numbers<[1], [0], [0], [1], [0, 0, 1, 1], [], []>} : vector<8x32xbf16>, vector<32x128xbf16>, vector<8x128xf32> -> vector<8x128xf32>
    %c0_5 = arith.constant 0 : index
    %c0_6 = arith.constant 0 : index
    %6 = vector.load %arg4[%c0_5, %c0_6] : memref<32x128xbf16, #tpu.memory_space<vmem>>, vector<32x128xbf16>
    %cst_7 = arith.constant dense<0.000000e+00> : vector<8x128xf32>
    %7 = tpu.matmul %3, %6, %cst_7 {dimension_numbers = #tpu.dot_dimension_numbers<[1], [0], [0], [1], [0, 0, 1, 1], [], []>} : vector<8x32xbf16>, vector<32x128xbf16>, vector<8x128xf32> -> vector<8x128xf32>
    %8 = arith.addf %5, %7 : vector<8x128xf32>
    %c0_8 = arith.constant 0 : index
    %c0_9 = arith.constant 0 : index
    %9 = vector.load %arg5[%c0_8, %c0_9] : memref<1x128xf32, #tpu.memory_space<vmem>>, vector<1x128xf32>
    %10 = vector.broadcast %9 : vector<1x128xf32> to vector<8x128xf32>
    %11 = arith.addf %8, %10 : vector<8x128xf32>
    %cst_10 = arith.constant 5.000000e-01 : f32
    %12 = vector.broadcast %cst_10 : f32 to vector<8x128xf32>
    %13 = arith.mulf %12, %11 : vector<8x128xf32>
    %cst_11 = arith.constant 4.471500e-02 : f32
    %14 = vector.broadcast %cst_11 : f32 to vector<8x128xf32>
    %15 = arith.mulf %14, %11 : vector<8x128xf32>
    %16 = arith.mulf %15, %11 : vector<8x128xf32>
    %17 = arith.mulf %16, %11 : vector<8x128xf32>
    %18 = arith.addf %11, %17 : vector<8x128xf32>
    %cst_12 = arith.constant 0.797884583 : f32
    %19 = vector.broadcast %cst_12 : f32 to vector<8x128xf32>
    %20 = arith.mulf %19, %18 : vector<8x128xf32>
    %21 = math.tanh %20 : vector<8x128xf32>
    %cst_13 = arith.constant 1.000000e+00 : f32
    %22 = vector.broadcast %cst_13 : f32 to vector<8x128xf32>
    %23 = arith.addf %22, %21 : vector<8x128xf32>
    %24 = arith.mulf %13, %23 : vector<8x128xf32>
    %25 = arith.truncf %24 : vector<8x128xf32> to vector<8x128xbf16>
    %c0_14 = arith.constant 0 : index
    %c0_15 = arith.constant 0 : index
    %26 = vector.load %arg6[%c0_14, %c0_15] : memref<128x128xbf16, #tpu.memory_space<vmem>>, vector<128x128xbf16>
    %cst_16 = arith.constant dense<0.000000e+00> : vector<8x128xf32>
    %27 = tpu.matmul %25, %26, %cst_16 {dimension_numbers = #tpu.dot_dimension_numbers<[1], [0], [0], [1], [0, 0, 1, 1], [], []>} : vector<8x128xbf16>, vector<128x128xbf16>, vector<8x128xf32> -> vector<8x128xf32>
    %c0_17 = arith.constant 0 : index
    %c0_18 = arith.constant 0 : index
    %28 = vector.load %arg7[%c0_17, %c0_18] : memref<1x128xf32, #tpu.memory_space<vmem>>, vector<1x128xf32>
    %29 = vector.broadcast %28 : vector<1x128xf32> to vector<8x128xf32>
    %30 = arith.addf %27, %29 : vector<8x128xf32>
    %cst_19 = arith.constant 5.000000e-01 : f32
    %31 = vector.broadcast %cst_19 : f32 to vector<8x128xf32>
    %32 = arith.mulf %31, %30 : vector<8x128xf32>
    %cst_20 = arith.constant 4.471500e-02 : f32
    %33 = vector.broadcast %cst_20 : f32 to vector<8x128xf32>
    %34 = arith.mulf %33, %30 : vector<8x128xf32>
    %35 = arith.mulf %34, %30 : vector<8x128xf32>
    %36 = arith.mulf %35, %30 : vector<8x128xf32>
    %37 = arith.addf %30, %36 : vector<8x128xf32>
    %cst_21 = arith.constant 0.797884583 : f32
    %38 = vector.broadcast %cst_21 : f32 to vector<8x128xf32>
    %39 = arith.mulf %38, %37 : vector<8x128xf32>
    %40 = math.tanh %39 : vector<8x128xf32>
    %cst_22 = arith.constant 1.000000e+00 : f32
    %41 = vector.broadcast %cst_22 : f32 to vector<8x128xf32>
    %42 = arith.addf %41, %40 : vector<8x128xf32>
    %43 = arith.mulf %32, %42 : vector<8x128xf32>
    %c0_23 = arith.constant 0 : index
    %c0_24 = arith.constant 0 : index
    %44 = vector.load %arg8[%c0_23, %c0_24] : memref<1x128xf32, #tpu.memory_space<vmem>>, vector<1x128xf32>
    %45 = vector.broadcast %44 : vector<1x128xf32> to vector<8x128xf32>
    %46 = arith.mulf %43, %45 : vector<8x128xf32>
    %cst_25 = arith.constant dense<0.000000e+00> : vector<8xf32>
    %47 = vector.multi_reduction <add>, %46, %cst_25 [1] : vector<8x128xf32> to vector<8xf32>
    %48 = vector.shape_cast %47 : vector<8xf32> to vector<8x1xf32>
    %c0_26 = arith.constant 0 : index
    %c0_27 = arith.constant 0 : index
    %49 = vector.load %arg9[%c0_26, %c0_27] : memref<1x1xf32, #tpu.memory_space<vmem>>, vector<1x1xf32>
    %50 = vector.broadcast %49 : vector<1x1xf32> to vector<8x1xf32>
    %51 = arith.addf %48, %50 : vector<8x1xf32>
    %c0_28 = arith.constant 0 : index
    %c0_29 = arith.constant 0 : index
    %52 = vector.load %arg10[%c0_28, %c0_29] : memref<8x1xf32, #tpu.memory_space<vmem>>, vector<8x1xf32>
    tpu.vector_store %arg10[%c0_28, %c0_29], %51 {strides = array<i32>} : memref<8x1xf32, #tpu.memory_space<vmem>>, vector<8x1xf32>,
    return
  }
  func.func @transform_0(%arg0: i32) -> (i32, i32) {
    %c0_i32 = arith.constant 0 : i32
    %c0_i32_0 = arith.constant 0 : i32
    return %arg0, %c0_i32 : i32, i32
  }
  func.func @transform_1(%arg0: i32) -> (i32, i32) {
    %c0_i32 = arith.constant 0 : i32
    %c0_i32_0 = arith.constant 0 : i32
    return %arg0, %c0_i32 : i32, i32
  }
  func.func @transform_2(%arg0: i32) -> (i32, i32) {
    %c0_i32 = arith.constant 0 : i32
    %c0_i32_0 = arith.constant 0 : i32
    %c0_i32_1 = arith.constant 0 : i32
    return %c0_i32, %c0_i32_0 : i32, i32
  }
  func.func @transform_3(%arg0: i32) -> (i32, i32) {
    %c0_i32 = arith.constant 0 : i32
    %c0_i32_0 = arith.constant 0 : i32
    %c0_i32_1 = arith.constant 0 : i32
    return %c0_i32, %c0_i32_0 : i32, i32
  }
  func.func @transform_4(%arg0: i32) -> (i32, i32) {
    %c0_i32 = arith.constant 0 : i32
    %c0_i32_0 = arith.constant 0 : i32
    %c0_i32_1 = arith.constant 0 : i32
    return %c0_i32, %c0_i32_0 : i32, i32
  }
  func.func @transform_5(%arg0: i32) -> (i32, i32) {
    %c0_i32 = arith.constant 0 : i32
    %c0_i32_0 = arith.constant 0 : i32
    %c0_i32_1 = arith.constant 0 : i32
    return %c0_i32, %c0_i32_0 : i32, i32
  }
  func.func @transform_6(%arg0: i32) -> (i32, i32) {
    %c0_i32 = arith.constant 0 : i32
    %c0_i32_0 = arith.constant 0 : i32
    %c0_i32_1 = arith.constant 0 : i32
    return %c0_i32, %c0_i32_0 : i32, i32
  }
  func.func @transform_7(%arg0: i32) -> (i32, i32) {
    %c0_i32 = arith.constant 0 : i32
    %c0_i32_0 = arith.constant 0 : i32
    %c0_i32_1 = arith.constant 0 : i32
    return %c0_i32, %c0_i32_0 : i32, i32
  }
  func.func @transform_8(%arg0: i32) -> (i32, i32) {
    %c0_i32 = arith.constant 0 : i32
    %c0_i32_0 = arith.constant 0 : i32
    %c0_i32_1 = arith.constant 0 : i32
    return %c0_i32, %c0_i32_0 : i32, i32
  }
  func.func @transform_9(%arg0: i32) -> (i32, i32) {
    %c0_i32 = arith.constant 0 : i32
    %c0_i32_0 = arith.constant 0 : i32
    return %arg0, %c0_i32 : i32, i32
  }
}

</mosaic_0001>

<llo_original>
// kernel: tpu_custom_call.1
$region0: #{tpu_custom_call.1}
  #allocation0 [shape = 'u32[]', space=smem, size = 0x4, offset = 0x4, fixed_abs, tag = 'smem constant byte address 0x4 - core index']
  #allocation1 [shape = 'u32[144,128]{1,0:T(1,128)}', space=vmem, size = 0x12000, scoped, tag = 'internal scratch']
  #allocation2 [shape = 'f32[1,1]{1,0:T(1,128)S(1)}', space=vmem, size = 0x200, scoped, tag = 'scoped memory for tpu_custom_call.1']
  %s0 = inlined_call_operand.hbm [shape: f32[8,32], index: 0, kind: input, shape index: {}]
  %s1 = inlined_call_operand.hbm [shape: f32[8,32], index: 1, kind: input, shape index: {}]
  %s2 = inlined_call_operand.hbm [shape: bf16[32,128], index: 2, kind: input, shape index: {}]
  %s3 = inlined_call_operand.hbm [shape: bf16[32,128], index: 3, kind: input, shape index: {}]
  %s4 = inlined_call_operand.vmem [shape: f32[1,128], index: 4, kind: input, shape index: {}]
  %s5 = inlined_call_operand.hbm [shape: bf16[128,128], index: 5, kind: input, shape index: {}]
  %s6 = inlined_call_operand.vmem [shape: f32[1,128], index: 6, kind: input, shape index: {}]
  %s7 = inlined_call_operand.vmem [shape: f32[1,128], index: 7, kind: input, shape index: {}]
  %s8 = inlined_call_operand.<no memory space> [shape: f32[1,1], index: 8, kind: input, shape index: {}]
  %s9 = inlined_call_operand.vmem [shape: f32[8,1], index: 9, kind: output, shape index: {}]
  %s10 = sld [smem:[#allocation0]]
  $region66: #{tpu_custom_call.1} parent=0
    _
  %s12 = ssub.s32 1, %s10
  %s13 = scalar_select 0, %s12, %s10
  %v14 = vstv %s8
  %15 = vst [vmem:[#allocation2] sm:$0x1] %v14
  $region1: #{tpu_custom_call.1} parent=0
    #allocation3 [shape = 'u8[4096]{0}', space=vmem, size = 0x1000, scoped, tag = 'input window, operand 0, single buffered']
    #allocation4 [shape = 's32[1]{0}', space=sflag, size = 0x4, scoped, tag = 'scoped memory for tpu_custom_call.1']
    #allocation5 [shape = 'u8[4096]{0}', space=vmem, size = 0x1000, scoped, tag = 'input window, operand 1, single buffered']
    #allocation6 [shape = 's32[1]{0}', space=sflag, size = 0x4, scoped, tag = 'scoped memory for tpu_custom_call.1']
    #allocation7 [shape = 'u8[8192]{0}', space=vmem, size = 0x2000, scoped, tag = 'input window, operand 2, single buffered']
    #allocation8 [shape = 'u8[8192]{0}', space=vmem, size = 0x2000, scoped, tag = 'input window, operand 3, single buffered']
    #allocation9 [shape = 's32[1]{0}', space=sflag, size = 0x4, scoped, tag = 'scoped memory for tpu_custom_call.1']
    #allocation10 [shape = 'u8[32768]{0}', space=vmem, size = 0x8000, scoped, tag = 'input window, operand 5, single buffered']
    %16 = vsyncpa [#allocation4], 0
    %17 = vsyncpa [#allocation6], 0
    %18 = vsyncpa [#allocation9], 0
    // Predicated region
    $region2: #{tpu_custom_call.1} parent=1 // pred_check
      _
    $region3: #{tpu_custom_call.1} parent=1 // pred_check_branch
      %20 = sbr.rel (0) target = $region5
    $region4: #{tpu_custom_call.1} parent=1 // pred_region
      %s22 = ssub.s32 128, 128
      %23 = vsyncadd [#allocation4], %s22
      %s25 = sshll.u32 [#allocation3], 4
      %s26 = int_to_ptr.vmem [resolvable:$true] %s25
      %28 = dma.hbm_to_vmem [thread:$0]  %s0, 128, %s26, [#allocation4]
    $region5: #{tpu_custom_call.1} parent=1 // pred_fallthru
      _
    // Predicated region
    $region6: #{tpu_custom_call.1} parent=1 // pred_check
      _
    $region7: #{tpu_custom_call.1} parent=1 // pred_check_branch
      %30 = sbr.rel (0) target = $region9
    $region8: #{tpu_custom_call.1} parent=1 // pred_region
      %s32 = ssub.s32 128, 128
      %33 = vsyncadd [#allocation6], %s32
      %s35 = sshll.u32 [#allocation5], 4
      %s36 = int_to_ptr.vmem [resolvable:$true] %s35
      %38 = dma.hbm_to_vmem [thread:$0]  %s1, 128, %s36, [#allocation6]
    $region9: #{tpu_custom_call.1} parent=1 // pred_fallthru
      _
    // Predicated region
    $region10: #{tpu_custom_call.1} parent=1 // pred_check
      _
    $region11: #{tpu_custom_call.1} parent=1 // pred_check_branch
      %40 = sbr.rel (0) target = $region13
    $region12: #{tpu_custom_call.1} parent=1 // pred_region
      %s42 = ssub.s32 256, 256
      %43 = vsyncadd [#allocation6], %s42
      %s44 = sshll.u32 [#allocation7], 4
      %s45 = int_to_ptr.vmem [resolvable:$true] %s44
      %50 = dma.hbm_to_vmem [thread:$0]  %s2, 256, %s45, [#allocation6], 64, 64, 4
    $region13: #{tpu_custom_call.1} parent=1 // pred_fallthru
      _
    // Predicated region
    $region14: #{tpu_custom_call.1} parent=1 // pred_check
      _
    $region15: #{tpu_custom_call.1} parent=1 // pred_check_branch
      %52 = sbr.rel (0) target = $region17
    $region16: #{tpu_custom_call.1} parent=1 // pred_region
      %s54 = ssub.s32 256, 256
      %55 = vsyncadd [#allocation9], %s54
      %s56 = sshll.u32 [#allocation8], 4
      %s57 = int_to_ptr.vmem [resolvable:$true] %s56
      %62 = dma.hbm_to_vmem [thread:$0]  %s3, 256, %s57, [#allocation9], 64, 64, 4
    $region17: #{tpu_custom_call.1} parent=1 // pred_fallthru
      _
    // Predicated region
    $region18: #{tpu_custom_call.1} parent=1 // pred_check
      _
    $region19: #{tpu_custom_call.1} parent=1 // pred_check_branch
      %64 = sbr.rel (0) target = $region21
    $region20: #{tpu_custom_call.1} parent=1 // pred_region
      _
    $region21: #{tpu_custom_call.1} parent=1 // pred_fallthru
      _
    // Predicated region
    $region22: #{tpu_custom_call.1} parent=1 // pred_check
      _
    $region23: #{tpu_custom_call.1} parent=1 // pred_check_branch
      %66 = sbr.rel (0) target = $region25
    $region24: #{tpu_custom_call.1} parent=1 // pred_region
      %s68 = ssub.s32 1024, 1024
      %69 = vsyncadd [#allocation9], %s68
      %s70 = sshll.u32 [#allocation10], 4
      %s71 = int_to_ptr.vmem [resolvable:$true] %s70
      %76 = dma.hbm_to_vmem [thread:$0]  %s5, 1024, %s71, [#allocation9], 64, 64, 4
    $region25: #{tpu_custom_call.1} parent=1 // pred_fallthru
      _
    // Predicated region
    $region26: #{tpu_custom_call.1} parent=1 // pred_check
      _
    $region27: #{tpu_custom_call.1} parent=1 // pred_check_branch
      %78 = sbr.rel (0) target = $region29
    $region28: #{tpu_custom_call.1} parent=1 // pred_region
      _
    $region29: #{tpu_custom_call.1} parent=1 // pred_fallthru
      _
    // Predicated region
    $region30: #{tpu_custom_call.1} parent=1 // pred_check
      _
    $region31: #{tpu_custom_call.1} parent=1 // pred_check_branch
      %80 = sbr.rel (0) target = $region33
    $region32: #{tpu_custom_call.1} parent=1 // pred_region
      _
    $region33: #{tpu_custom_call.1} parent=1 // pred_fallthru
      _
    // Predicated region
    $region34: #{tpu_custom_call.1} parent=1 // pred_check
      _
    $region35: #{tpu_custom_call.1} parent=1 // pred_check_branch
      %82 = sbr.rel (0) target = $region37
    $region36: #{tpu_custom_call.1} parent=1 // pred_region
      _
    $region37: #{tpu_custom_call.1} parent=1 // pred_fallthru
      _
    // Predicated region
    $region38: #{tpu_custom_call.1} parent=1 // pred_check
      _
    $region39: #{tpu_custom_call.1} parent=1 // pred_check_branch
      %84 = sbr.rel (0) target = $region41
    $region40: #{tpu_custom_call.1} parent=1 // pred_region
      %85 = dma.done [#allocation4], 128
    $region41: #{tpu_custom_call.1} parent=1 // pred_fallthru
      _
    // Predicated region
    $region42: #{tpu_custom_call.1} parent=1 // pred_check
      _
    $region43: #{tpu_custom_call.1} parent=1 // pred_check_branch
      %87 = sbr.rel (0) target = $region45
    $region44: #{tpu_custom_call.1} parent=1 // pred_region
      %88 = dma.done [#allocation6], 128
    $region45: #{tpu_custom_call.1} parent=1 // pred_fallthru
      _
    // Predicated region
    $region46: #{tpu_custom_call.1} parent=1 // pred_check
      _
    $region47: #{tpu_custom_call.1} parent=1 // pred_check_branch
      %90 = sbr.rel (0) target = $region49
    $region48: #{tpu_custom_call.1} parent=1 // pred_region
      %91 = dma.done [#allocation6], 256
    $region49: #{tpu_custom_call.1} parent=1 // pred_fallthru
      _
    // Predicated region
    $region50: #{tpu_custom_call.1} parent=1 // pred_check
      _
    $region51: #{tpu_custom_call.1} parent=1 // pred_check_branch
      %93 = sbr.rel (0) target = $region53
    $region52: #{tpu_custom_call.1} parent=1 // pred_region
      %94 = dma.done [#allocation9], 256
    $region53: #{tpu_custom_call.1} parent=1 // pred_fallthru
      _
    // Predicated region
    $region54: #{tpu_custom_call.1} parent=1 // pred_check
      _
    $region55: #{tpu_custom_call.1} parent=1 // pred_check_branch
      %96 = sbr.rel (0) target = $region57
    $region56: #{tpu_custom_call.1} parent=1 // pred_region
      %97 = dma.done [#allocation9], 1024
    $region57: #{tpu_custom_call.1} parent=1 // pred_fallthru
      _
    %v99 = vld [vmem:[#allocation3] sm:$0xff]
    %v100 = vpack.c.bf16 %v99, %v99
    %v101 = vld [vmem:[#allocation5] sm:$0xff]
    %v102 = vpack.c.bf16 %v101, %v101
    %v103 = vld [vmem:[#allocation7] sm:$0xf]
    %v104 = vld [vmem:[#allocation7 + $0x4] sm:$0xf]
    %v105 = vld [vmem:[#allocation7 + $0x8] sm:$0xf]
    %v106 = vld [vmem:[#allocation7 + $0xc] sm:$0xf]
    %v107 = vld [vmem:[#allocation8] sm:$0xf]
    %v108 = vld [vmem:[#allocation8 + $0x4] sm:$0xf]
    %v109 = vld [vmem:[#allocation8 + $0x8] sm:$0xf]
    %v110 = vld [vmem:[#allocation8 + $0xc] sm:$0xf]
    %v115 = vunpack.c.l.b16 %v107
    %v116 = vunpack.c.l.b16 %v108
    %v117 = vunpack.c.l.b16 %v109
    %v118 = vunpack.c.l.b16 %v110
    %v119 = vpack.c.b16 %v116, %v115
    %v120 = vpack.c.b16 %v118, %v117
    %vm123 = vcmask 261120
    %v125 = vsel %vm123, %v102, 0
    %127 = vmatprep.subr.bf16.mxu0 0
    %128 = vmatpush1.bf16.msra.mxu0 %v119
    %129 = vmatprep.subr.bf16.mxu0 0
    %130 = vmatpush1.bf16.msra.mxu0 %v120
    %131 = vmatprep.subr.bf16.mxu0 0
    %132 = vmatpush1.bf16.msra.mxu0 0
    %133 = vmatprep.subr.bf16.mxu0 0
    %134 = vmatpush1.bf16.msra.mxu0 0
    %135 = vmatprep.subr.bf16.mxu0 0
    %136 = vmatpush1.bf16.msra.mxu0 0
    %137 = vmatprep.subr.bf16.mxu0 0
    %138 = vmatpush1.bf16.msra.mxu0 0
    %139 = vmatprep.subr.bf16.mxu0 0
    %140 = vmatpush1.bf16.msra.mxu0 0
    %141 = vmatprep.subr.bf16.mxu0 0
    %142 = vmatpush1.bf16.msra.mxu0 0
    %143 = vmatprep.subr.bf16.mxu0 0
    %144 = vmatpush1.bf16.msra.mxu0 0
    %145 = vmatprep.subr.bf16.mxu0 0
    %146 = vmatpush1.bf16.msra.mxu0 0
    %147 = vmatprep.subr.bf16.mxu0 0
    %148 = vmatpush1.bf16.msra.mxu0 0
    %149 = vmatprep.subr.bf16.mxu0 0
    %150 = vmatpush1.bf16.msra.mxu0 0
    %151 = vmatprep.subr.bf16.mxu0 0
    %152 = vmatpush1.bf16.msra.mxu0 0
    %153 = vmatprep.subr.bf16.mxu0 0
    %154 = vmatpush1.bf16.msra.mxu0 0
    %155 = vmatprep.subr.bf16.mxu0 0
    %156 = vmatpush1.bf16.msra.mxu0 0
    %157 = vmatprep.subr.bf16.mxu0 0
    %158 = vmatpush1.bf16.msra.mxu0 0
    %159 = vmatprep.mubr.bf16.mxu0 0
    %160 = vmatmul.mubr.bf16.gmra.mrb[0].mxu0 %v125
    %v161 = vpop.f32.mrb[0].mxu0
    %v162 = vadd.f32 0.0, %v161
    %v163 = vpop.f32.mrb[0].mxu0
    %v164 = vpop.f32.mrb[0].mxu0
    %v165 = vpop.f32.mrb[0].mxu0
    %166 = vdwg.mxu0
    %v171 = vunpack.c.l.b16 %v103
    %v172 = vunpack.c.l.b16 %v104
    %v173 = vunpack.c.l.b16 %v105
    %v174 = vunpack.c.l.b16 %v106
    %v175 = vpack.c.b16 %v172, %v171
    %v176 = vpack.c.b16 %v174, %v173
    %v180 = vsel %vm123, %v100, 0
    %182 = vmatprep.subr.bf16.mxu0 0
    %183 = vmatpush1.bf16.msra.mxu0 %v175
    %184 = vmatprep.subr.bf16.mxu0 0
    %185 = vmatpush1.bf16.msra.mxu0 %v176
    %186 = vmatprep.subr.bf16.mxu0 0
    %187 = vmatpush1.bf16.msra.mxu0 0
    %188 = vmatprep.subr.bf16.mxu0 0
    %189 = vmatpush1.bf16.msra.mxu0 0
    %190 = vmatprep.subr.bf16.mxu0 0
    %191 = vmatpush1.bf16.msra.mxu0 0
    %192 = vmatprep.subr.bf16.mxu0 0
    %193 = vmatpush1.bf16.msra.mxu0 0
    %194 = vmatprep.subr.bf16.mxu0 0
    %195 = vmatpush1.bf16.msra.mxu0 0
    %196 = vmatprep.subr.bf16.mxu0 0
    %197 = vmatpush1.bf16.msra.mxu0 0
    %198 = vmatprep.subr.bf16.mxu0 0
    %199 = vmatpush1.bf16.msra.mxu0 0
    %200 = vmatprep.subr.bf16.mxu0 0
    %201 = vmatpush1.bf16.msra.mxu0 0
    %202 = vmatprep.subr.bf16.mxu0 0
    %203 = vmatpush1.bf16.msra.mxu0 0
    %204 = vmatprep.subr.bf16.mxu0 0
    %205 = vmatpush1.bf16.msra.mxu0 0
    %206 = vmatprep.subr.bf16.mxu0 0
    %207 = vmatpush1.bf16.msra.mxu0 0
    %208 = vmatprep.subr.bf16.mxu0 0
    %209 = vmatpush1.bf16.msra.mxu0 0
    %210 = vmatprep.subr.bf16.mxu0 0
    %211 = vmatpush1.bf16.msra.mxu0 0
    %212 = vmatprep.subr.bf16.mxu0 0
    %213 = vmatpush1.bf16.msra.mxu0 0
    %214 = vmatprep.mubr.bf16.mxu0 0
    %215 = vmatmul.mubr.bf16.gmra.mrb[0].mxu0 %v180
    %v216 = vpop.f32.mrb[0].mxu0
    %v217 = vadd.f32 %v162, %v216
    %v218 = vpop.f32.mrb[0].mxu0
    %v219 = vpop.f32.mrb[0].mxu0
    %v220 = vpop.f32.mrb[0].mxu0
    %221 = vdwg.mxu0
    %v222 = vld [vmem:[%s4] sm:$0x1]
    %v224 = vlaneseq
    %v225 = vshrl.u32 %v224, 7
    %v226 = vsub.s32 0, %v225
    %v227 = vrot.slane %v222, %v226
    %v229 = vadd.f32 %v217, %v227
    %v230 = vmul.f32 %v229, 0.5
    %v231 = vmul.f32 %v229, 0.044715
    %v232 = vmul.f32 %v231, %v229
    %v233 = vmul.f32 %v232, %v229
    %v234 = vadd.f32 %v229, %v233
    %v235 = vmul.f32 %v234, 0.7978846
    %v236 = vtanh.pop %v235
    %v237 = vadd.f32 %v236, 1.0
    %v238 = vmul.f32 %v230, %v237
    %v239 = vpack.c.bf16 %v238, %v238
    %v240 = vld [vmem:[#allocation10] sm:$0xf]
    %v241 = vld [vmem:[#allocation10 + $0x4] sm:$0xf]
    %v242 = vld [vmem:[#allocation10 + $0x8] sm:$0xf]
    %v243 = vld [vmem:[#allocation10 + $0xc] sm:$0xf]
    %v244 = vld [vmem:[#allocation10 + $0x10] sm:$0xf]
    %v245 = vld [vmem:[#allocation10 + $0x14] sm:$0xf]
    %v246 = vld [vmem:[#allocation10 + $0x18] sm:$0xf]
    %v247 = vld [vmem:[#allocation10 + $0x1c] sm:$0xf]
    %v248 = vld [vmem:[#allocation10 + $0x20] sm:$0xf]
    %v249 = vld [vmem:[#allocation10 + $0x24] sm:$0xf]
    %v250 = vld [vmem:[#allocation10 + $0x28] sm:$0xf]
    %v251 = vld [vmem:[#allocation10 + $0x2c] sm:$0xf]
    %v252 = vld [vmem:[#allocation10 + $0x30] sm:$0xf]
    %v253 = vld [vmem:[#allocation10 + $0x34] sm:$0xf]
    %v254 = vld [vmem:[#allocation10 + $0x38] sm:$0xf]
    %v255 = vld [vmem:[#allocation10 + $0x3c] sm:$0xf]
    %v256 = vld [vmem:[%s6] sm:$0x1]
    %v258 = vlaneseq
    %v259 = vshrl.u32 %v258, 7
    %v260 = vsub.s32 0, %v259
    %v261 = vrot.slane %v256, %v260
    %v279 = vunpack.c.l.b16 %v240
    %v280 = vunpack.c.l.b16 %v241
    %v281 = vunpack.c.l.b16 %v242
    %v282 = vunpack.c.l.b16 %v243
    %v283 = vunpack.c.l.b16 %v244
    %v284 = vunpack.c.l.b16 %v245
    %v285 = vunpack.c.l.b16 %v246
    %v286 = vunpack.c.l.b16 %v247
    %v287 = vunpack.c.l.b16 %v248
    %v288 = vunpack.c.l.b16 %v249
    %v289 = vunpack.c.l.b16 %v250
    %v290 = vunpack.c.l.b16 %v251
    %v291 = vunpack.c.l.b16 %v252
    %v292 = vunpack.c.l.b16 %v253
    %v293 = vunpack.c.l.b16 %v254
    %v294 = vunpack.c.l.b16 %v255
    %v295 = vpack.c.b16 %v280, %v279
    %v296 = vpack.c.b16 %v282, %v281
    %v297 = vpack.c.b16 %v284, %v283
    %v298 = vpack.c.b16 %v286, %v285
    %v299 = vpack.c.b16 %v288, %v287
    %v300 = vpack.c.b16 %v290, %v289
    %v301 = vpack.c.b16 %v292, %v291
    %v302 = vpack.c.b16 %v294, %v293
    %311 = vmatprep.subr.bf16.mxu0 0
    %312 = vmatpush1.bf16.msra.mxu0 %v295
    %313 = vmatprep.subr.bf16.mxu0 0
    %314 = vmatpush1.bf16.msra.mxu0 %v296
    %315 = vmatprep.subr.bf16.mxu0 0
    %316 = vmatpush1.bf16.msra.mxu0 %v297
    %317 = vmatprep.subr.bf16.mxu0 0
    %318 = vmatpush1.bf16.msra.mxu0 %v298
    %319 = vmatprep.subr.bf16.mxu0 0
    %320 = vmatpush1.bf16.msra.mxu0 %v299
    %321 = vmatprep.subr.bf16.mxu0 0
    %322 = vmatpush1.bf16.msra.mxu0 %v300
    %323 = vmatprep.subr.bf16.mxu0 0
    %324 = vmatpush1.bf16.msra.mxu0 %v301
    %325 = vmatprep.subr.bf16.mxu0 0
    %326 = vmatpush1.bf16.msra.mxu0 %v302
    %327 = vmatprep.subr.bf16.mxu0 0
    %328 = vmatpush1.bf16.msra.mxu0 0
    %329 = vmatprep.subr.bf16.mxu0 0
    %330 = vmatpush1.bf16.msra.mxu0 0
    %331 = vmatprep.subr.bf16.mxu0 0
    %332 = vmatpush1.bf16.msra.mxu0 0
    %333 = vmatprep.subr.bf16.mxu0 0
    %334 = vmatpush1.bf16.msra.mxu0 0
    %335 = vmatprep.subr.bf16.mxu0 0
    %336 = vmatpush1.bf16.msra.mxu0 0
    %337 = vmatprep.subr.bf16.mxu0 0
    %338 = vmatpush1.bf16.msra.mxu0 0
    %339 = vmatprep.subr.bf16.mxu0 0
    %340 = vmatpush1.bf16.msra.mxu0 0
    %341 = vmatprep.subr.bf16.mxu0 0
    %342 = vmatpush1.bf16.msra.mxu0 0
    %343 = vmatprep.mubr.bf16.mxu0 0
    %344 = vmatmul.mubr.bf16.gmra.mrb[0].mxu0 %v239
    %v345 = vpop.f32.mrb[0].mxu0
    %v346 = vadd.f32 %v261, %v345
    %v347 = vpop.f32.mrb[0].mxu0
    %v348 = vpop.f32.mrb[0].mxu0
    %v349 = vpop.f32.mrb[0].mxu0
    %350 = vdwg.mxu0
    %v351 = vmul.f32 %v346, 0.5
    %v352 = vmul.f32 %v346, 0.044715
    %v353 = vmul.f32 %v352, %v346
    %v354 = vmul.f32 %v353, %v346
    %v355 = vadd.f32 %v346, %v354
    %v356 = vmul.f32 %v355, 0.7978846
    %v357 = vtanh.pop %v356
    %v358 = vadd.f32 %v357, 1.0
    %v359 = vmul.f32 %v351, %v358
    %v360 = vld [vmem:[%s7] sm:$0x1]
    %v362 = vlaneseq
    %v363 = vshrl.u32 %v362, 7
    %v364 = vsub.s32 0, %v363
    %v365 = vrot.slane %v360, %v364
    %v367 = vmul.f32 %v359, %v365
    %368 = vadd.xlane.f32.xlu0 %v367
    %v369 = vpop.xlane.xlu0 %368
    %v370 = vld [vmem:[#allocation2] sm:$0x1]
    %v372 = vlaneseq
    %v373 = vshrl.u32 %v372, 7
    %v374 = vsub.s32 0, %v373
    %v375 = vrot.slane %v370, %v374
    %v377 = vadd.f32 %v369, %v375
    %vm378 = vcmask 7168
    %379 = vst.msk [vmem:[%s9] sm:$0xff] %vm378, %v377
    // Predicated region
    $region58: #{tpu_custom_call.1} parent=1 // pred_check
      _
    $region59: #{tpu_custom_call.1} parent=1 // pred_check_branch
      %381 = sbr.rel (0) target = $region61
    $region60: #{tpu_custom_call.1} parent=1 // pred_region
      _
    $region61: #{tpu_custom_call.1} parent=1 // pred_fallthru
      _
    // Predicated region
    $region62: #{tpu_custom_call.1} parent=1 // pred_check
      _
    $region63: #{tpu_custom_call.1} parent=1 // pred_check_branch
      %383 = sbr.rel (0) target = $region65
    $region64: #{tpu_custom_call.1} parent=1 // pred_region
      _
    $region65: #{tpu_custom_call.1} parent=1 // pred_fallthru
      _
    %384 = vsyncpa [#allocation4], 1
    %385 = vsyncpa [#allocation6], 1
    %386 = vsyncpa [#allocation9], 1

</llo_original>
